<compile_context>
chip_gen: v7x
topology: tpu7x:2x2x1
jax: 0.10.0
libtpu: 0.0.40
codegen_flags: <defaults>
</compile_context>

<pallas_src>
import math

import jax
import jax.numpy as jnp
from jax.experimental import pallas as pl
from jax.experimental.pallas import tpu as pltpu

# TODO(synk): the pretrained transformer backbone (AutoModel.from_pretrained)
# has no Pallas equivalent; a deterministic synthetic encoder layer stands in.


def classification_head_kernel(x_ref, we_ref, be_ref, wc_ref, bc_ref,
                               o_ref, pooled_acc):
    """One (batch_tile, seq_tile) grid step of the fused head.

    x_ref:       (BT, ST, H)   token-embedding tile
    we_ref:      (H, H)        synthetic encoder weight
    be_ref:      (1, H)        synthetic encoder bias
    wc_ref:      (H, CP)       classifier weight (lane-padded)
    bc_ref:      (1, CP)       classifier bias   (lane-padded)
    o_ref:       (BT, CP)      logits tile (lane-padded)
    pooled_acc:  (BT, H) f32   VMEM accumulator for the sequence sum
    """
    s_idx = pl.program_id(1)

    @pl.when(s_idx == 0)
    def _init():
        pooled_acc[...] = jnp.zeros_like(pooled_acc)

    bt, st, h = x_ref.shape
    # Single lane-dense MXU matmul over the flattened (BT*ST, H) tile instead
    # of BT tiny batched matmuls; f32 accumulation.
    x2d = x_ref[...].reshape(bt * st, h)
    enc = jnp.tanh(
        jnp.dot(x2d, we_ref[...], preferred_element_type=jnp.float32)
        + be_ref[...]                                   # (1, H) broadcast
    )
    # Partial xlnet pooling: sum over this sequence tile, accumulate in f32.
    pooled_acc[...] += jnp.sum(enc.reshape(bt, st, h), axis=1)

    @pl.when(s_idx == pl.num_programs(1) - 1)
    def _finalize():
        # dropout is identity at inference; classifier runs once per batch tile
        o_ref[...] = (
            jnp.dot(pooled_acc[...], wc_ref[...],
                    preferred_element_type=jnp.float32)
            + bc_ref[...]
        ).astype(o_ref.dtype)


def _divisor_tile(total: int, target: int, quantum: int = 8) -> int:
    """Largest divisor of `total` <= target, preferring multiples of `quantum`."""
    if total <= target:
        return total
    best, best_aligned = 1, None
    for d in range(1, target + 1):
        if total % d == 0:
            best = d
            if d % quantum == 0:
                best_aligned = d
    return best_aligned if best_aligned is not None else best


def sequence_classification_forward(embeddings, we, be, wc, bc, *,
                                    batch_tile=None, seq_tile=None,
                                    compute_dtype=None):
    """logits = (sum_S tanh(x @ We + be)) @ Wc + bc, fused in one pallas_call."""
    B, S, H = embeddings.shape
    C = wc.shape[-1]
    C_pad = ((C + 127) // 128) * 128                    # lane-dense output

    # Optional reduced-precision matmul operands (e.g. bf16 on v6e/v7x);
    # accumulation stays f32 via preferred_element_type.
    if compute_dtype is not None:
        embeddings = embeddings.astype(compute_dtype)
        we = we.astype(compute_dtype)
        wc = wc.astype(compute_dtype)
    be2 = be.reshape(1, H).astype(jnp.float32)
    bc2 = jnp.pad(bc.reshape(1, C).astype(jnp.float32), ((0, 0), (0, C_pad - C)))
    wc_p = jnp.pad(wc, ((0, 0), (0, C_pad - C)))

    # Tile selection: batch axis sharded across TensorCores ("parallel"),
    # sequence axis is the reduction ("arbitrary", last). Keep the per-step
    # working set small enough that double-buffering fits v7x's 64 MiB VMEM.
    if batch_tile is None:
        batch_tile = _divisor_tile(B, max(8, B // 2))
    if seq_tile is None:
        itemsize = jnp.dtype(embeddings.dtype).itemsize
        budget = 8 << 20                                 # per x-tile buffer
        max_st = max(1, budget // max(1, batch_tile * H * itemsize))
        seq_tile = _divisor_tile(S, min(S, max_st))
    assert B % batch_tile == 0 and S % seq_tile == 0

    grid = (B // batch_tile, S // seq_tile)

    def nbytes(shape, dtype):
        return math.prod(shape) * jnp.dtype(dtype).itemsize

    working = (
        2 * nbytes((batch_tile, seq_tile, H), embeddings.dtype)   # x (dbl buf)
        + 2 * (nbytes((H, H), we.dtype) + nbytes((1, H), be2.dtype))
        + 2 * (nbytes((H, C_pad), wc_p.dtype) + nbytes((1, C_pad), bc2.dtype))
        + 2 * nbytes((batch_tile, C_pad), jnp.float32)            # output
        + nbytes((batch_tile, H), jnp.float32)                    # accumulator
    )
    vmem_limit = int(min(max(2 * working, 8 << 20), 64 << 20))

    out_padded = pl.pallas_call(
        classification_head_kernel,
        out_shape=jax.ShapeDtypeStruct((B, C_pad), jnp.float32),
        grid_spec=pltpu.PrefetchScalarGridSpec(
            num_scalar_prefetch=0,
            grid=grid,
            in_specs=[
                pl.BlockSpec((batch_tile, seq_tile, H), lambda b, s: (b, s, 0)),
                pl.BlockSpec((H, H), lambda b, s: (0, 0)),
                pl.BlockSpec((1, H), lambda b, s: (0, 0)),
                pl.BlockSpec((H, C_pad), lambda b, s: (0, 0)),
                pl.BlockSpec((1, C_pad), lambda b, s: (0, 0)),
            ],
            out_specs=pl.BlockSpec((batch_tile, C_pad), lambda b, s: (b, 0)),
            scratch_shapes=[pltpu.VMEM((batch_tile, H), jnp.float32)],
        ),
        compiler_params=pltpu.CompilerParams(
            dimension_semantics=("parallel", "arbitrary"),
            vmem_limit_bytes=vmem_limit,
        ),
    )(embeddings, we, be2, wc_p, bc2)

    return out_padded[:, :C]


def reference_forward(embeddings, we, be, wc, bc):
    hp = jax.lax.Precision.HIGHEST
    h = jnp.tanh(
        jnp.einsum("bsh,hk->bsk", embeddings, we, precision=hp)
        + be.reshape(1, 1, -1)
    )
    pooled = jnp.sum(h, axis=1)
    return jnp.dot(pooled, wc, precision=hp) + bc.reshape(1, -1)


if __name__ == "__main__":
    # small shapes: batch=16, seq=16, hidden=32, vocab=64, num_classes=4
    # (batch/seq tiles of 8 exercise both the parallel batch axis and the
    #  multi-step sequence reduction with accumulator init/finalize).
    B, S, H, V, C = 16, 16, 32, 64, 4

    key = jax.random.PRNGKey(0)
    k_emb, k_ids, k_we, k_be, k_wc, k_bc = jax.random.split(key, 6)

    # deterministic synthetic parameters
    emb_table = jax.random.normal(k_emb, (V, H), dtype=jnp.float32) * 0.02
    we = jax.random.normal(k_we, (H, H), dtype=jnp.float32) * 0.1
    be = jax.random.normal(k_be, (H,), dtype=jnp.float32) * 0.1
    wc = jax.random.normal(k_wc, (H, C), dtype=jnp.float32) * 0.1
    bc = jax.random.normal(k_bc, (C,), dtype=jnp.float32) * 0.1

    # inputs: input_ids and attention_mask (mask unused by the synthetic backbone)
    input_ids = jax.random.randint(k_ids, (B, S), 0, V)
    attention_mask = jnp.ones((B, S), dtype=jnp.int32)

    # plain-JAX glue: embedding lookup (the "backbone input")
    embeddings = emb_table[input_ids]                          # (B, S, H)

    logits = sequence_classification_forward(
        embeddings, we, be, wc, bc, batch_tile=8, seq_tile=8)
    logits = jax.block_until_ready(logits)

    ref = reference_forward(embeddings, we, be, wc, bc)
    assert logits.shape == (B, C)
    assert jnp.allclose(logits, ref, atol=1e-4, rtol=1e-4), (
        "Pallas output mismatch vs JAX reference"
    )

    print("KERNEL_OK")
</pallas_src>

<mosaic_0001>
module attributes {stable_mosaic.version = 11 : i64} {
  func.func @classification_head_kernel(%arg0: i32, %arg1: i32, %arg2: memref<8x8x32xf32, #tpu.memory_space<vmem>>, %arg3: memref<32x32xf32, #tpu.memory_space<vmem>>, %arg4: memref<1x32xf32, #tpu.memory_space<vmem>>, %arg5: memref<32x128xf32, #tpu.memory_space<vmem>>, %arg6: memref<1x128xf32, #tpu.memory_space<vmem>>, %arg7: memref<8x128xf32, #tpu.memory_space<vmem>>, %arg8: memref<8x32xf32, #tpu.memory_space<vmem>>) attributes {dimension_semantics = [#tpu.dimension_semantics<parallel>, #tpu.dimension_semantics<arbitrary>], iteration_bounds = array<i64: 2, 2>, scalar_prefetch = 0 : i64, scratch_operands = 1 : i64, tpu.core_type = #tpu.core_type<tc>, window_params = [{transform_indices = @transform_0, window_bounds = array<i64: 8, 8, 32>}, {pipeline_mode = #tpu.pipeline_mode<synchronous>, transform_indices = @transform_1, window_bounds = array<i64: 32, 32>}, {pipeline_mode = #tpu.pipeline_mode<synchronous>, transform_indices = @transform_2, window_bounds = array<i64: 1, 32>}, {pipeline_mode = #tpu.pipeline_mode<synchronous>, transform_indices = @transform_3, window_bounds = array<i64: 32, 128>}, {pipeline_mode = #tpu.pipeline_mode<synchronous>, transform_indices = @transform_4, window_bounds = array<i64: 1, 128>}, {transform_indices = @transform_5, window_bounds = array<i64: 8, 128>}]} {
    %c0_i32 = arith.constant 0 : i32
    %0 = arith.cmpi eq, %arg1, %c0_i32 : i32
    %1 = arith.extui %0 : i1 to i32
    %c0_i32_0 = arith.constant 0 : i32
    %2 = arith.cmpi ne, %1, %c0_i32_0 : i32
    scf.if %2 {
      %cst_13 = arith.constant 0.000000e+00 : f32
      %19 = vector.broadcast %cst_13 : f32 to vector<8x32xf32>
      %c0_14 = arith.constant 0 : index
      %c0_15 = arith.constant 0 : index
      %20 = vector.load %arg8[%c0_14, %c0_15] : memref<8x32xf32, #tpu.memory_space<vmem>>, vector<8x32xf32>
      tpu.vector_store %arg8[%c0_14, %c0_15], %19 {strides = array<i32>} : memref<8x32xf32, #tpu.memory_space<vmem>>, vector<8x32xf32>,
    } else {
    }
    %c0 = arith.constant 0 : index
    %c0_1 = arith.constant 0 : index
    %c0_2 = arith.constant 0 : index
    %3 = vector.load %arg2[%c0, %c0_1, %c0_2] : memref<8x8x32xf32, #tpu.memory_space<vmem>>, vector<8x8x32xf32>
    %4 = vector.shape_cast %3 : vector<8x8x32xf32> to vector<64x32xf32>
    %c0_3 = arith.constant 0 : index
    %c0_4 = arith.constant 0 : index
    %5 = vector.load %arg3[%c0_3, %c0_4] : memref<32x32xf32, #tpu.memory_space<vmem>>, vector<32x32xf32>
    %cst = arith.constant dense<0.000000e+00> : vector<64x32xf32>
    %6 = tpu.matmul %4, %5, %cst {dimension_numbers = #tpu.dot_dimension_numbers<[1], [0], [0], [1], [0, 0, 1, 1], [], []>} : vector<64x32xf32>, vector<32x32xf32>, vector<64x32xf32> -> vector<64x32xf32>
    %c0_5 = arith.constant 0 : index
    %c0_6 = arith.constant 0 : index
    %7 = vector.load %arg4[%c0_5, %c0_6] : memref<1x32xf32, #tpu.memory_space<vmem>>, vector<1x32xf32>
    %8 = vector.broadcast %7 : vector<1x32xf32> to vector<64x32xf32>
    %9 = arith.addf %6, %8 : vector<64x32xf32>
    %10 = math.tanh %9 : vector<64x32xf32>
    %c0_7 = arith.constant 0 : index
    %c0_8 = arith.constant 0 : index
    %11 = vector.load %arg8[%c0_7, %c0_8] : memref<8x32xf32, #tpu.memory_space<vmem>>, vector<8x32xf32>
    %12 = vector.shape_cast %10 : vector<64x32xf32> to vector<8x8x32xf32>
    %cst_9 = arith.constant dense<0.000000e+00> : vector<8x32xf32>
    %13 = vector.multi_reduction <add>, %12, %cst_9 [1] : vector<8x8x32xf32> to vector<8x32xf32>
    %14 = arith.addf %11, %13 : vector<8x32xf32>
    %c0_10 = arith.constant 0 : index
    %c0_11 = arith.constant 0 : index
    %15 = vector.load %arg8[%c0_10, %c0_11] : memref<8x32xf32, #tpu.memory_space<vmem>>, vector<8x32xf32>
    tpu.vector_store %arg8[%c0_10, %c0_11], %14 {strides = array<i32>} : memref<8x32xf32, #tpu.memory_space<vmem>>, vector<8x32xf32>,
    %c1_i32 = arith.constant 1 : i32
    %16 = arith.cmpi eq, %arg1, %c1_i32 : i32
    %17 = arith.extui %16 : i1 to i32
    %c0_i32_12 = arith.constant 0 : i32
    %18 = arith.cmpi ne, %17, %c0_i32_12 : i32
    scf.if %18 {
      %c0_13 = arith.constant 0 : index
      %c0_14 = arith.constant 0 : index
      %19 = vector.load %arg8[%c0_13, %c0_14] : memref<8x32xf32, #tpu.memory_space<vmem>>, vector<8x32xf32>
      %c0_15 = arith.constant 0 : index
      %c0_16 = arith.constant 0 : index
      %20 = vector.load %arg5[%c0_15, %c0_16] : memref<32x128xf32, #tpu.memory_space<vmem>>, vector<32x128xf32>
      %cst_17 = arith.constant dense<0.000000e+00> : vector<8x128xf32>
      %21 = tpu.matmul %19, %20, %cst_17 {dimension_numbers = #tpu.dot_dimension_numbers<[1], [0], [0], [1], [0, 0, 1, 1], [], []>} : vector<8x32xf32>, vector<32x128xf32>, vector<8x128xf32> -> vector<8x128xf32>
      %c0_18 = arith.constant 0 : index
      %c0_19 = arith.constant 0 : index
      %22 = vector.load %arg6[%c0_18, %c0_19] : memref<1x128xf32, #tpu.memory_space<vmem>>, vector<1x128xf32>
      %23 = vector.broadcast %22 : vector<1x128xf32> to vector<8x128xf32>
      %24 = arith.addf %21, %23 : vector<8x128xf32>
      %c0_20 = arith.constant 0 : index
      %c0_21 = arith.constant 0 : index
      %25 = vector.load %arg7[%c0_20, %c0_21] : memref<8x128xf32, #tpu.memory_space<vmem>>, vector<8x128xf32>
      tpu.vector_store %arg7[%c0_20, %c0_21], %24 {strides = array<i32>} : memref<8x128xf32, #tpu.memory_space<vmem>>, vector<8x128xf32>,
    } else {
    }
    return
  }
  func.func @transform_0(%arg0: i32, %arg1: i32) -> (i32, i32, i32) {
    %c0_i32 = arith.constant 0 : i32
    %c0_i32_0 = arith.constant 0 : i32
    return %arg0, %arg1, %c0_i32 : i32, i32, i32
  }
  func.func @transform_1(%arg0: i32, %arg1: i32) -> (i32, i32) {
    %c0_i32 = arith.constant 0 : i32
    %c0_i32_0 = arith.constant 0 : i32
    %c0_i32_1 = arith.constant 0 : i32
    return %c0_i32, %c0_i32_0 : i32, i32
  }
  func.func @transform_2(%arg0: i32, %arg1: i32) -> (i32, i32) {
    %c0_i32 = arith.constant 0 : i32
    %c0_i32_0 = arith.constant 0 : i32
    %c0_i32_1 = arith.constant 0 : i32
    return %c0_i32, %c0_i32_0 : i32, i32
  }
  func.func @transform_3(%arg0: i32, %arg1: i32) -> (i32, i32) {
    %c0_i32 = arith.constant 0 : i32
    %c0_i32_0 = arith.constant 0 : i32
    %c0_i32_1 = arith.constant 0 : i32
    return %c0_i32, %c0_i32_0 : i32, i32
  }
  func.func @transform_4(%arg0: i32, %arg1: i32) -> (i32, i32) {
    %c0_i32 = arith.constant 0 : i32
    %c0_i32_0 = arith.constant 0 : i32
    %c0_i32_1 = arith.constant 0 : i32
    return %c0_i32, %c0_i32_0 : i32, i32
  }
  func.func @transform_5(%arg0: i32, %arg1: i32) -> (i32, i32) {
    %c0_i32 = arith.constant 0 : i32
    %c0_i32_0 = arith.constant 0 : i32
    return %arg0, %c0_i32 : i32, i32
  }
}

</mosaic_0001>

<llo_original>
// kernel: tpu_custom_call.1
$region0: #{tpu_custom_call.1}
  #allocation0 [shape = 'u32[]', space=smem, size = 0x4, offset = 0x4, fixed_abs, tag = 'smem constant byte address 0x4 - core index']
  #allocation1 [shape = 'u32[144,128]{1,0:T(1,128)}', space=vmem, size = 0x12000, scoped, tag = 'internal scratch']
  #allocation2 [shape = 'f32[8,32]{1,0:T(8,128)}', space=vmem, size = 0x1000, scoped, tag = 'scratch operand']
  %s0 = inlined_call_operand.hbm [shape: f32[16,16,32], index: 0, kind: input, shape index: {}]
  %s1 = inlined_call_operand.hbm [shape: f32[32,32], index: 1, kind: input, shape index: {}]
  %s2 = inlined_call_operand.vmem [shape: f32[1,32], index: 2, kind: input, shape index: {}]
  %s3 = inlined_call_operand.hbm [shape: f32[32,128], index: 3, kind: input, shape index: {}]
  %s4 = inlined_call_operand.vmem [shape: f32[1,128], index: 4, kind: input, shape index: {}]
  %s5 = inlined_call_operand.hbm [shape: f32[16,128], index: 5, kind: output, shape index: {}]
  %s6 = sld [smem:[#allocation0]]
  $region73: #{tpu_custom_call.1} parent=0
    _
  %s8 = ssub.s32 1, %s6
  %s9 = scalar_select 0, %s8, %s6
  $region1: #{tpu_custom_call.1} parent=0
    #allocation3 [shape = 'u8[65536]{0}', space=vmem, size = 0x10000, scoped, tag = 'input window, operand 0']
    #allocation4 [shape = 's32[2]{0}', space=sflag, size = 0x8, scoped, tag = 'scoped memory for tpu_custom_call.1']
    #allocation5 [shape = 's32[2]{0}', space=sflag, size = 0x8, scoped, tag = 'scoped memory for tpu_custom_call.1']
    #allocation6 [shape = 'u8[16384]{0}', space=vmem, size = 0x4000, scoped, tag = 'input window, operand 1, single buffered']
    #allocation7 [shape = 's32[1]{0}', space=sflag, size = 0x4, scoped, tag = 'scoped memory for tpu_custom_call.1']
    #allocation8 [shape = 'u8[16384]{0}', space=vmem, size = 0x4000, scoped, tag = 'input window, operand 3, single buffered']
    #allocation9 [shape = 'u8[8192]{0}', space=vmem, size = 0x2000, scoped, tag = 'output window, operand 0']
    %10 = vsyncpa [#allocation4], 0
    %s11 = scalar_lea.sflag [#allocation4], 1
    %12 = vsyncpa %s11, 0
    %13 = vsyncpa [#allocation7], 0
    %14 = vsyncpa [#allocation5], 0
    %s15 = scalar_lea.sflag [#allocation5], 1
    %16 = vsyncpa %s15, 0
    loop: start=0, step=1, limit=6
    $region2: #{tpu_custom_call.1} parent=1 // loop_pre_header
      _
    $region3: #{tpu_custom_call.1} parent=1 // loop_header
      %s18 = sphi 0, %s22
      %p19 = scmp.ge.s32.totalorder %s18, 6
      %s25 = sphi 0, %s37
      %s26 = sphi 0, %s33
      %s27 = sphi 0, %s25
      %s28 = sphi 0, %s26
      %s29 = sphi 0, %s27
      %s30 = sphi 0, %s28
      %s42 = sphi 0, %s44
      %s45 = sphi 0, %s42
      %s46 = sphi 0, %s45
      %s62 = sphi 0, %s46
      %s66 = sphi 0, %s66
      %s68 = sphi 0, %s66
      %s69 = sphi 0, %s68
      %s83 = sphi 0, %s69
      %s87 = sphi 0, %s87
      %s89 = sphi 0, %s87
      %s90 = sphi 0, %s89
      %s104 = sphi 0, %s90
      %s108 = sphi 0, %s108
      %s110 = sphi 0, %s108
      %s111 = sphi 0, %s110
      %s125 = sphi 0, %s111
      %s129 = sphi 0, %s129
      %s131 = sphi 0, %s129
      %s132 = sphi 0, %s131
      %s146 = sphi 0, %s132
      %s152 = sphi 0, %s154
      %s155 = sphi 0, %s152
      %s156 = sphi 0, %s155
      %s172 = sphi 0, %s156
    $region4: #{tpu_custom_call.1} parent=1 // loop_header_branch
      %21 = sbr.rel (%p19) target = $region8
    $region5: #{tpu_custom_call.1} parent=1 // loop_body
      %s23 = ssub.s32 %s18, 1
      %s24 = ssub.s32 %s18, 2
      %s31 = sadd.s32 1, %s26
      %p32 = scmp.ge.s32.totalorder %s31, 2
      %s33 = scalar_select %p32, 0, %s31
      %s34 = sadd.s32 1, %s25
      %s35 = scalar_select %p32, %s34, %s25
      %p36 = scmp.ge.s32.totalorder %s35, 2
      %s37 = scalar_select %p36, 0, %s35
      %s38 = ssub.s32 %s25, %s37
      %s39 = ssub.s32 %s26, %s33
      %s40 = sor.u32 %s38, %s39
      %p41 = scmp.eq.s32.totalorder %s40, 0
      %s43 = sadd.s32 %s42, 1
      %s44 = scalar_select %p41, %s42, %s43
      %p47 = pneg %p41
      %p48 = scmp.eq.s32.totalorder %s18, 3
      %p49 = por %p47, %p48
      %p50 = scmp.ne.s32.totalorder %s42, %s45
      %p51 = scmp.eq.s32.totalorder %s18, 0
      %p52 = por %p50, %p51
      %p53 = scmp.ne.s32.totalorder %s42, %s45
      %p54 = scmp.eq.s32.totalorder %s23, 3
      %p55 = por %p53, %p54
      %p56 = scmp.ne.s32.totalorder %s45, %s46
      %p57 = scmp.eq.s32.totalorder %s23, 0
      %p58 = por %p56, %p57
      %p59 = scmp.ne.s32.totalorder %s45, %s46
      %p60 = scmp.eq.s32.totalorder %s24, 3
      %p61 = por %p59, %p60
      %p63 = scmp.ne.s32.totalorder %s46, %s62
      %p64 = scmp.eq.s32.totalorder %s24, 0
      %p65 = por %p63, %p64
      %s67 = sadd.s32 %s66, 1
      %p70 = scmp.eq.s32.totalorder %s18, 3
      %p71 = scmp.ne.s32.totalorder %s66, %s68
      %p72 = scmp.eq.s32.totalorder %s18, 0
      %p73 = por %p71, %p72
      %p74 = scmp.ne.s32.totalorder %s66, %s68
      %p75 = scmp.eq.s32.totalorder %s23, 3
      %p76 = por %p74, %p75
      %p77 = scmp.ne.s32.totalorder %s68, %s69
      %p78 = scmp.eq.s32.totalorder %s23, 0
      %p79 = por %p77, %p78
      %p80 = scmp.ne.s32.totalorder %s68, %s69
      %p81 = scmp.eq.s32.totalorder %s24, 3
      %p82 = por %p80, %p81
      %p84 = scmp.ne.s32.totalorder %s69, %s83
      %p85 = scmp.eq.s32.totalorder %s24, 0
      %p86 = por %p84, %p85
      %s88 = sadd.s32 %s87, 1
      %p91 = scmp.eq.s32.totalorder %s18, 3
      %p92 = scmp.ne.s32.totalorder %s87, %s89
      %p93 = scmp.eq.s32.totalorder %s18, 0
      %p94 = por %p92, %p93
      %p95 = scmp.ne.s32.totalorder %s87, %s89
      %p96 = scmp.eq.s32.totalorder %s23, 3
      %p97 = por %p95, %p96
      %p98 = scmp.ne.s32.totalorder %s89, %s90
      %p99 = scmp.eq.s32.totalorder %s23, 0
      %p100 = por %p98, %p99
      %p101 = scmp.ne.s32.totalorder %s89, %s90
      %p102 = scmp.eq.s32.totalorder %s24, 3
      %p103 = por %p101, %p102
      %p105 = scmp.ne.s32.totalorder %s90, %s104
      %p106 = scmp.eq.s32.totalorder %s24, 0
      %p107 = por %p105, %p106
      %s109 = sadd.s32 %s108, 1
      %p112 = scmp.eq.s32.totalorder %s18, 3
      %p113 = scmp.ne.s32.totalorder %s108, %s110
      %p114 = scmp.eq.s32.totalorder %s18, 0
      %p115 = por %p113, %p114
      %p116 = scmp.ne.s32.totalorder %s108, %s110
      %p117 = scmp.eq.s32.totalorder %s23, 3
      %p118 = por %p116, %p117
      %p119 = scmp.ne.s32.totalorder %s110, %s111
      %p120 = scmp.eq.s32.totalorder %s23, 0
      %p121 = por %p119, %p120
      %p122 = scmp.ne.s32.totalorder %s110, %s111
      %p123 = scmp.eq.s32.totalorder %s24, 3
      %p124 = por %p122, %p123
      %p126 = scmp.ne.s32.totalorder %s111, %s125
      %p127 = scmp.eq.s32.totalorder %s24, 0
      %p128 = por %p126, %p127
      %s130 = sadd.s32 %s129, 1
      %p133 = scmp.eq.s32.totalorder %s18, 3
      %p134 = scmp.ne.s32.totalorder %s129, %s131
      %p135 = scmp.eq.s32.totalorder %s18, 0
      %p136 = por %p134, %p135
      %p137 = scmp.ne.s32.totalorder %s129, %s131
      %p138 = scmp.eq.s32.totalorder %s23, 3
      %p139 = por %p137, %p138
      %p140 = scmp.ne.s32.totalorder %s131, %s132
      %p141 = scmp.eq.s32.totalorder %s23, 0
      %p142 = por %p140, %p141
      %p143 = scmp.ne.s32.totalorder %s131, %s132
      %p144 = scmp.eq.s32.totalorder %s24, 3
      %p145 = por %p143, %p144
      %p147 = scmp.ne.s32.totalorder %s132, %s146
      %p148 = scmp.eq.s32.totalorder %s24, 0
      %p149 = por %p147, %p148
      %s150 = ssub.s32 %s25, %s37
      %p151 = scmp.eq.s32.totalorder %s150, 0
      %s153 = sadd.s32 %s152, 1
      %s154 = scalar_select %p151, %s152, %s153
      %p157 = pneg %p151
      %p158 = scmp.eq.s32.totalorder %s18, 3
      %p159 = por %p157, %p158
      %p160 = scmp.ne.s32.totalorder %s152, %s155
      %p161 = scmp.eq.s32.totalorder %s18, 0
      %p162 = por %p160, %p161
      %p163 = scmp.ne.s32.totalorder %s152, %s155
      %p164 = scmp.eq.s32.totalorder %s23, 3
      %p165 = por %p163, %p164
      %p166 = scmp.ne.s32.totalorder %s155, %s156
      %p167 = scmp.eq.s32.totalorder %s23, 0
      %p168 = por %p166, %p167
      %p169 = scmp.ne.s32.totalorder %s155, %s156
      %p170 = scmp.eq.s32.totalorder %s24, 3
      %p171 = por %p169, %p170
      %p173 = scmp.ne.s32.totalorder %s156, %s172
      %p174 = scmp.eq.s32.totalorder %s24, 0
      %p175 = por %p173, %p174
      %p176 = scmp.le.s32.totalorder 1, %s18
      %p177 = scmp.lt.s32.totalorder %s18, 5
      %p178 = pnand %p176, %p177
      %p179 = pneg %p178
      // Predicated region
      $region9: #{tpu_custom_call.1} parent=5 // pred_check
        _
      $region10: #{tpu_custom_call.1} parent=5 // pred_check_branch
        %181 = sbr.rel (%p178) target = $region12
      $region11: #{tpu_custom_call.1} parent=5 // pred_region
        %s182 = ssub.s32 %s18, 1
        // Predicated region
        $region13: #{tpu_custom_call.1} parent=11 // pred_check
          %p183 = pneg %p79
        $region14: #{tpu_custom_call.1} parent=11 // pred_check_branch
          %185 = sbr.rel (%p183) target = $region16
        $region15: #{tpu_custom_call.1} parent=11 // pred_region
          %s187 = ssub.s32 512, 512
          %188 = vsyncadd [#allocation7], %s187
          %s189 = sshll.u32 [#allocation6], 4
          %s190 = int_to_ptr.vmem [resolvable:$true] %s189
          %195 = dma.hbm_to_vmem [thread:$0]  %s1, 512, %s190, [#allocation7], 128, 128, 8
        $region16: #{tpu_custom_call.1} parent=11 // pred_fallthru
          _
        // Predicated region
        $region17: #{tpu_custom_call.1} parent=11 // pred_check
          %p196 = pneg %p100
        $region18: #{tpu_custom_call.1} parent=11 // pred_check_branch
          %198 = sbr.rel (%p196) target = $region20
        $region19: #{tpu_custom_call.1} parent=11 // pred_region
          _
        $region20: #{tpu_custom_call.1} parent=11 // pred_fallthru
          _
        // Predicated region
        $region21: #{tpu_custom_call.1} parent=11 // pred_check
          %p199 = pneg %p121
        $region22: #{tpu_custom_call.1} parent=11 // pred_check_branch
          %201 = sbr.rel (%p199) target = $region24
        $region23: #{tpu_custom_call.1} parent=11 // pred_region
          %s203 = ssub.s32 512, 512
          %204 = vsyncadd [#allocation7], %s203
          %s205 = sshll.u32 [#allocation8], 4
          %s206 = int_to_ptr.vmem [resolvable:$true] %s205
          %211 = dma.hbm_to_vmem [thread:$0]  %s3, 512, %s206, [#allocation7], 128, 128, 8
        $region24: #{tpu_custom_call.1} parent=11 // pred_fallthru
          _
        // Predicated region
        $region25: #{tpu_custom_call.1} parent=11 // pred_check
          %p212 = pneg %p142
        $region26: #{tpu_custom_call.1} parent=11 // pred_check_branch
          %214 = sbr.rel (%p212) target = $region28
        $region27: #{tpu_custom_call.1} parent=11 // pred_region
          _
        $region28: #{tpu_custom_call.1} parent=11 // pred_fallthru
          _
      $region12: #{tpu_custom_call.1} parent=5 // pred_fallthru
        _
      %p215 = scmp.lt.s32.totalorder %s18, 4
      // Predicated region
      $region29: #{tpu_custom_call.1} parent=5 // pred_check
        %p216 = pneg %p215
      $region30: #{tpu_custom_call.1} parent=5 // pred_check_branch
        %218 = sbr.rel (%p216) target = $region32
      $region31: #{tpu_custom_call.1} parent=5 // pred_region
        // Predicated region
        $region33: #{tpu_custom_call.1} parent=31 // pred_check
          %p219 = pneg %p52
        $region34: #{tpu_custom_call.1} parent=31 // pred_check_branch
          %221 = sbr.rel (%p219) target = $region36
        $region35: #{tpu_custom_call.1} parent=31 // pred_region
          %s222 = sand.u32 %s42, 1
          %s223 = scalar_lea.sflag [#allocation4], %s222
          %s224 = sand.u32 %s42, 1
          %s225 = smul.addr %s224, 64
          %s226 = scalar_lea.vmem [#allocation3], %s225
          %s227 = smul.u32 8, %s25
          %s229 = ssub.s32 1024, 1024
          %230 = vsyncadd %s223, %s229
          %s231 = smul.addr %s227, 2
          %s232 = sadd.s32 %s26, %s231
          %s233 = smul.addr %s232, 128
          %s234 = scalar_lea.hbm %s0, %s233
          %s235 = sshll.u32 %s226, 4
          %s236 = int_to_ptr.vmem [resolvable:$true] %s235
          %241 = dma.hbm_to_vmem [thread:$0]  %s234, 1024, %s236, %s223, 256, 128, 8
        $region36: #{tpu_custom_call.1} parent=31 // pred_fallthru
          _
      $region32: #{tpu_custom_call.1} parent=5 // pred_fallthru
        _
      %p242 = scmp.le.s32.totalorder 1, %s18
      %p243 = scmp.lt.s32.totalorder %s18, 5
      %p244 = pnand %p242, %p243
      %p245 = pneg %p244
      // Predicated region
      $region37: #{tpu_custom_call.1} parent=5 // pred_check
        _
      $region38: #{tpu_custom_call.1} parent=5 // pred_check_branch
        %247 = sbr.rel (%p244) target = $region40
      $region39: #{tpu_custom_call.1} parent=5 // pred_region
        %s248 = ssub.s32 %s18, 1
        %s249 = sand.u32 %s45, 1
        %s250 = scalar_lea.sflag [#allocation4], %s249
        %s251 = sand.u32 %s45, 1
        %s252 = smul.addr %s251, 64
        %s253 = scalar_lea.vmem [#allocation3], %s252
        // Predicated region
        $region41: #{tpu_custom_call.1} parent=39 // pred_check
          %p254 = pneg %p58
        $region42: #{tpu_custom_call.1} parent=39 // pred_check_branch
          %256 = sbr.rel (%p254) target = $region44
        $region43: #{tpu_custom_call.1} parent=39 // pred_region
          %257 = dma.done %s250, 1024
        $region44: #{tpu_custom_call.1} parent=39 // pred_fallthru
          _
        // Predicated region
        $region45: #{tpu_custom_call.1} parent=39 // pred_check
          %p258 = pneg %p79
        $region46: #{tpu_custom_call.1} parent=39 // pred_check_branch
          %260 = sbr.rel (%p258) target = $region48
        $region47: #{tpu_custom_call.1} parent=39 // pred_region
          %261 = dma.done [#allocation7], 512
        $region48: #{tpu_custom_call.1} parent=39 // pred_fallthru
          _
        // Predicated region
        $region49: #{tpu_custom_call.1} parent=39 // pred_check
          %p262 = pneg %p121
        $region50: #{tpu_custom_call.1} parent=39 // pred_check_branch
          %264 = sbr.rel (%p262) target = $region52
        $region51: #{tpu_custom_call.1} parent=39 // pred_region
          %265 = dma.done [#allocation7], 512
        $region52: #{tpu_custom_call.1} parent=39 // pred_fallthru
          _
        %s266 = sand.u32 %s45, 1
        %s267 = scalar_lea.sflag [#allocation4], %s266
        %s268 = sand.u32 %s45, 1
        %s269 = smul.addr %s268, 64
        %s270 = scalar_lea.vmem [#allocation3], %s269
        %p271 = pneg %p58
        %p272 = pneg %p55
        %p273 = pneg %p79
        %p274 = pneg %p76
        %p275 = pneg %p100
        %p276 = pneg %p97
        %p277 = pneg %p121
        %p278 = pneg %p118
        %p279 = pneg %p142
        %p280 = pneg %p139
        %p281 = pneg %p168
        %p282 = pneg %p165
        %s283 = sand.u32 %s155, 1
        %s284 = scalar_lea.sflag [#allocation5], %s283
        %s285 = sand.u32 %s155, 1
        %s286 = smul.addr %s285, 8
        %s287 = scalar_lea.vmem [#allocation9], %s286
        %s288 = smul.u32 8, %s27
        %p289 = scmp.eq.s32.totalorder %s28, 0
        // Predicated region
        $region53: #{tpu_custom_call.1} parent=39 // pred_check
          %p290 = pneg %p289
        $region54: #{tpu_custom_call.1} parent=39 // pred_check_branch
          %292 = sbr.rel (%p290) target = $region56
        $region55: #{tpu_custom_call.1} parent=39 // pred_region
          %vm293 = vcmask 261120
          %294 = vst.msk [vmem:[#allocation2] sm:$0xff] %vm293, 0.0
        $region56: #{tpu_custom_call.1} parent=39 // pred_fallthru
          _
        %v295 = vld [vmem:[%s253] sm:$0xff]
        %v296 = vld [vmem:[%s253 + $0x8] sm:$0xff]
        %v297 = vld [vmem:[%s253 + $0x10] sm:$0xff]
        %v298 = vld [vmem:[%s253 + $0x18] sm:$0xff]
        %v299 = vld [vmem:[%s253 + $0x20] sm:$0xff]
        %v300 = vld [vmem:[%s253 + $0x28] sm:$0xff]
        %v301 = vld [vmem:[%s253 + $0x30] sm:$0xff]
        %v302 = vld [vmem:[%s253 + $0x38] sm:$0xff]
        %v303 = vld [vmem:[#allocation6] sm:$0xff]
        %v304 = vld [vmem:[#allocation6 + $0x8] sm:$0xff]
        %v305 = vld [vmem:[#allocation6 + $0x10] sm:$0xff]
        %v306 = vld [vmem:[#allocation6 + $0x18] sm:$0xff]
        %v307 = vld [vmem:[%s2] sm:$0x1]
        %v309 = vlaneseq
        %v310 = vshrl.u32 %v309, 7
        %v311 = vsub.s32 0, %v310
        %v312 = vrot.slane %v307, %v311
        %vm314 = vcmask 261120
        %v316 = vsel %vm314, %v295, 0
        %v319 = vsel %vm314, %v296, 0
        %v322 = vsel %vm314, %v297, 0
        %v325 = vsel %vm314, %v298, 0
        %v328 = vsel %vm314, %v299, 0
        %v331 = vsel %vm314, %v300, 0
        %v334 = vsel %vm314, %v301, 0
        %v337 = vsel %vm314, %v302, 0
        %339 = vmatprep.subr.mxu0 0.0
        %340 = vmatpush1.msra.mxu0 %v303
        %341 = vmatprep.subr.mxu0 0.0
        %342 = vmatpush1.msra.mxu0 %v304
        %343 = vmatprep.subr.mxu0 0.0
        %344 = vmatpush1.msra.mxu0 %v305
        %345 = vmatprep.subr.mxu0 0.0
        %346 = vmatpush1.msra.mxu0 %v306
        %347 = vmatprep.subr.mxu0 0.0
        %348 = vmatpush1.msra.mxu0 0.0
        %349 = vmatprep.subr.mxu0 0.0
        %350 = vmatpush1.msra.mxu0 0.0
        %351 = vmatprep.subr.mxu0 0.0
        %352 = vmatpush1.msra.mxu0 0.0
        %353 = vmatprep.subr.mxu0 0.0
        %354 = vmatpush1.msra.mxu0 0.0
        %355 = vmatprep.subr.mxu0 0.0
        %356 = vmatpush1.msra.mxu0 0.0
        %357 = vmatprep.subr.mxu0 0.0
        %358 = vmatpush1.msra.mxu0 0.0
        %359 = vmatprep.subr.mxu0 0.0
        %360 = vmatpush1.msra.mxu0 0.0
        %361 = vmatprep.subr.mxu0 0.0
        %362 = vmatpush1.msra.mxu0 0.0
        %363 = vmatprep.subr.mxu0 0.0
        %364 = vmatpush1.msra.mxu0 0.0
        %365 = vmatprep.subr.mxu0 0.0
        %366 = vmatpush1.msra.mxu0 0.0
        %367 = vmatprep.subr.mxu0 0.0
        %368 = vmatpush1.msra.mxu0 0.0
        %369 = vmatprep.subr.mxu0 0.0
        %370 = vmatpush1.msra.mxu0 0.0
        %371 = vmatprep.subr.mxu0 0.0
        %372 = vmatpush1.msra.mxu0 0.0
        %373 = vmatprep.subr.mxu0 0.0
        %374 = vmatpush1.msra.mxu0 0.0
        %375 = vmatprep.subr.mxu0 0.0
        %376 = vmatpush1.msra.mxu0 0.0
        %377 = vmatprep.subr.mxu0 0.0
        %378 = vmatpush1.msra.mxu0 0.0
        %379 = vmatprep.subr.mxu0 0.0
        %380 = vmatpush1.msra.mxu0 0.0
        %381 = vmatprep.subr.mxu0 0.0
        %382 = vmatpush1.msra.mxu0 0.0
        %383 = vmatprep.subr.mxu0 0.0
        %384 = vmatpush1.msra.mxu0 0.0
        %385 = vmatprep.subr.mxu0 0.0
        %386 = vmatpush1.msra.mxu0 0.0
        %387 = vmatprep.subr.mxu0 0.0
        %388 = vmatpush1.msra.mxu0 0.0
        %389 = vmatprep.subr.mxu0 0.0
        %390 = vmatpush1.msra.mxu0 0.0
        %391 = vmatprep.subr.mxu0 0.0
        %392 = vmatpush1.msra.mxu0 0.0
        %393 = vmatprep.subr.mxu0 0.0
        %394 = vmatpush1.msra.mxu0 0.0
        %395 = vmatprep.subr.mxu0 0.0
        %396 = vmatpush1.msra.mxu0 0.0
        %397 = vmatprep.subr.mxu0 0.0
        %398 = vmatpush1.msra.mxu0 0.0
        %399 = vmatprep.subr.mxu0 0.0
        %400 = vmatpush1.msra.mxu0 0.0
        %401 = vmatprep.subr.mxu0 0.0
        %402 = vmatpush1.msra.mxu0 0.0
        %403 = vmatprep.mubr.f32.mxu0 0.0
        %404 = vmatmul.mubr.f32.gmra.mrb[0].mxu0 %v316
        %v405 = vpop.f32.mrb[0].mxu0
        %v406 = vadd.f32 %v312, %v405
        %v407 = vpop.f32.mrb[0].mxu0
        %408 = vmatprep.mubr.f32.mxu0 0.0
        %409 = vmatmul.mubr.f32.gmra.mrb[0].mxu0 %v319
        %v410 = vpop.f32.mrb[0].mxu0
        %v411 = vadd.f32 %v312, %v410
        %v412 = vpop.f32.mrb[0].mxu0
        %413 = vmatprep.mubr.f32.mxu0 0.0
        %414 = vmatmul.mubr.f32.gmra.mrb[0].mxu0 %v322
        %v415 = vpop.f32.mrb[0].mxu0
        %v416 = vadd.f32 %v312, %v415
        %v417 = vpop.f32.mrb[0].mxu0
        %418 = vmatprep.mubr.f32.mxu0 0.0
        %419 = vmatmul.mubr.f32.gmra.mrb[0].mxu0 %v325
        %v420 = vpop.f32.mrb[0].mxu0
        %v421 = vadd.f32 %v312, %v420
        %v422 = vpop.f32.mrb[0].mxu0
        %423 = vmatprep.mubr.f32.mxu0 0.0
        %424 = vmatmul.mubr.f32.gmra.mrb[0].mxu0 %v328
        %v425 = vpop.f32.mrb[0].mxu0
        %v426 = vadd.f32 %v312, %v425
        %v427 = vpop.f32.mrb[0].mxu0
        %428 = vmatprep.mubr.f32.mxu0 0.0
        %429 = vmatmul.mubr.f32.gmra.mrb[0].mxu0 %v331
        %v430 = vpop.f32.mrb[0].mxu0
        %v431 = vadd.f32 %v312, %v430
        %v432 = vpop.f32.mrb[0].mxu0
        %433 = vmatprep.mubr.f32.mxu0 0.0
        %434 = vmatmul.mubr.f32.gmra.mrb[0].mxu0 %v334
        %v435 = vpop.f32.mrb[0].mxu0
        %v436 = vadd.f32 %v312, %v435
        %v437 = vpop.f32.mrb[0].mxu0
        %438 = vmatprep.mubr.f32.mxu0 0.0
        %439 = vmatmul.mubr.f32.gmra.mrb[0].mxu0 %v337
        %v440 = vpop.f32.mrb[0].mxu0
        %v441 = vadd.f32 %v312, %v440
        %v442 = vpop.f32.mrb[0].mxu0
        %443 = vdwg.mxu0
        %v444 = vtanh.pop %v406
        %v445 = vtanh.pop %v411
        %v446 = vtanh.pop %v416
        %v447 = vtanh.pop %v421
        %v448 = vtanh.pop %v426
        %v449 = vtanh.pop %v431
        %v450 = vtanh.pop %v436
        %v451 = vtanh.pop %v441
        %v452 = vld [vmem:[#allocation2] sm:$0xff]
        %v453 = vsel %vm314, %v444, 0.0
        %v454 = vrot.slane %v453, 4
        %v455 = vadd.f32 %v453, %v454
        %v456 = vrot.slane %v455, 2
        %v457 = vadd.f32 %v455, %v456
        %v458 = vrot.slane %v457, 1
        %v459 = vadd.f32 %v457, %v458
        %v460 = vsel %vm314, %v445, 0.0
        %v461 = vrot.slane %v460, 4
        %v462 = vadd.f32 %v460, %v461
        %v463 = vrot.slane %v462, 2
        %v464 = vadd.f32 %v462, %v463
        %v465 = vrot.slane %v464, 1
        %v466 = vadd.f32 %v464, %v465
        %v467 = vsel %vm314, %v446, 0.0
        %v468 = vrot.slane %v467, 4
        %v469 = vadd.f32 %v467, %v468
        %v470 = vrot.slane %v469, 2
        %v471 = vadd.f32 %v469, %v470
        %v472 = vrot.slane %v471, 1
        %v473 = vadd.f32 %v471, %v472
        %v474 = vsel %vm314, %v447, 0.0
        %v475 = vrot.slane %v474, 4
        %v476 = vadd.f32 %v474, %v475
        %v477 = vrot.slane %v476, 2
        %v478 = vadd.f32 %v476, %v477
        %v479 = vrot.slane %v478, 1
        %v480 = vadd.f32 %v478, %v479
        %v481 = vsel %vm314, %v448, 0.0
        %v482 = vrot.slane %v481, 4
        %v483 = vadd.f32 %v481, %v482
        %v484 = vrot.slane %v483, 2
        %v485 = vadd.f32 %v483, %v484
        %v486 = vrot.slane %v485, 1
        %v487 = vadd.f32 %v485, %v486
        %v488 = vsel %vm314, %v449, 0.0
        %v489 = vrot.slane %v488, 4
        %v490 = vadd.f32 %v488, %v489
        %v491 = vrot.slane %v490, 2
        %v492 = vadd.f32 %v490, %v491
        %v493 = vrot.slane %v492, 1
        %v494 = vadd.f32 %v492, %v493
        %v495 = vsel %vm314, %v450, 0.0
        %v496 = vrot.slane %v495, 4
        %v497 = vadd.f32 %v495, %v496
        %v498 = vrot.slane %v497, 2
        %v499 = vadd.f32 %v497, %v498
        %v500 = vrot.slane %v499, 1
        %v501 = vadd.f32 %v499, %v500
        %v502 = vsel %vm314, %v451, 0.0
        %v503 = vrot.slane %v502, 4
        %v504 = vadd.f32 %v502, %v503
        %v505 = vrot.slane %v504, 2
        %v506 = vadd.f32 %v504, %v505
        %v507 = vrot.slane %v506, 1
        %v508 = vadd.f32 %v506, %v507
        %vm517 = vcmask 1041409
        %v518 = vsel %vm517, %v466, %v459
        %vm519 = vcmask 1042434
        %v520 = vsel %vm519, %v473, %v518
        %vm521 = vcmask 1043459
        %v522 = vsel %vm521, %v480, %v520
        %vm523 = vcmask 1044484
        %v524 = vsel %vm523, %v487, %v522
        %vm525 = vcmask 1045509
        %v526 = vsel %vm525, %v494, %v524
        %vm527 = vcmask 1046534
        %v528 = vsel %vm527, %v501, %v526
        %vm529 = vcmask 1047559
        %v530 = vsel %vm529, %v508, %v528
        %v532 = vadd.f32 %v452, %v530
        %533 = vst.msk [vmem:[#allocation2] sm:$0xff] %vm314, %v532
        %p534 = scmp.eq.s32.totalorder %s28, 1
        // Predicated region
        $region57: #{tpu_custom_call.1} parent=39 // pred_check
          %p535 = pneg %p534
        $region58: #{tpu_custom_call.1} parent=39 // pred_check_branch
          %537 = sbr.rel (%p535) target = $region60
        $region59: #{tpu_custom_call.1} parent=39 // pred_region
          %v538 = vld [vmem:[#allocation2] sm:$0xff]
          %v539 = vld [vmem:[#allocation8] sm:$0xff]
          %v540 = vld [vmem:[#allocation8 + $0x8] sm:$0xff]
          %v541 = vld [vmem:[#allocation8 + $0x10] sm:$0xff]
          %v542 = vld [vmem:[#allocation8 + $0x18] sm:$0xff]
          %v543 = vld [vmem:[%s4] sm:$0x1]
          %v545 = vlaneseq
          %v546 = vshrl.u32 %v545, 7
          %v547 = vsub.s32 0, %v546
          %v548 = vrot.slane %v543, %v547
          %v551 = vsel %vm314, %v538, 0
          %553 = vmatprep.subr.mxu0 0.0
          %554 = vmatpush1.msra.mxu0 %v539
          %555 = vmatprep.subr.mxu0 0.0
          %556 = vmatpush1.msra.mxu0 %v540
          %557 = vmatprep.subr.mxu0 0.0
          %558 = vmatpush1.msra.mxu0 %v541
          %559 = vmatprep.subr.mxu0 0.0
          %560 = vmatpush1.msra.mxu0 %v542
          %561 = vmatprep.subr.mxu0 0.0
          %562 = vmatpush1.msra.mxu0 0.0
          %563 = vmatprep.subr.mxu0 0.0
          %564 = vmatpush1.msra.mxu0 0.0
          %565 = vmatprep.subr.mxu0 0.0
          %566 = vmatpush1.msra.mxu0 0.0
          %567 = vmatprep.subr.mxu0 0.0
          %568 = vmatpush1.msra.mxu0 0.0
          %569 = vmatprep.subr.mxu0 0.0
          %570 = vmatpush1.msra.mxu0 0.0
          %571 = vmatprep.subr.mxu0 0.0
          %572 = vmatpush1.msra.mxu0 0.0
          %573 = vmatprep.subr.mxu0 0.0
          %574 = vmatpush1.msra.mxu0 0.0
          %575 = vmatprep.subr.mxu0 0.0
          %576 = vmatpush1.msra.mxu0 0.0
          %577 = vmatprep.subr.mxu0 0.0
          %578 = vmatpush1.msra.mxu0 0.0
          %579 = vmatprep.subr.mxu0 0.0
          %580 = vmatpush1.msra.mxu0 0.0
          %581 = vmatprep.subr.mxu0 0.0
          %582 = vmatpush1.msra.mxu0 0.0
          %583 = vmatprep.subr.mxu0 0.0
          %584 = vmatpush1.msra.mxu0 0.0
          %585 = vmatprep.subr.mxu0 0.0
          %586 = vmatpush1.msra.mxu0 0.0
          %587 = vmatprep.subr.mxu0 0.0
          %588 = vmatpush1.msra.mxu0 0.0
          %589 = vmatprep.subr.mxu0 0.0
          %590 = vmatpush1.msra.mxu0 0.0
          %591 = vmatprep.subr.mxu0 0.0
          %592 = vmatpush1.msra.mxu0 0.0
          %593 = vmatprep.subr.mxu0 0.0
          %594 = vmatpush1.msra.mxu0 0.0
          %595 = vmatprep.subr.mxu0 0.0
          %596 = vmatpush1.msra.mxu0 0.0
          %597 = vmatprep.subr.mxu0 0.0
          %598 = vmatpush1.msra.mxu0 0.0
          %599 = vmatprep.subr.mxu0 0.0
          %600 = vmatpush1.msra.mxu0 0.0
          %601 = vmatprep.subr.mxu0 0.0
          %602 = vmatpush1.msra.mxu0 0.0
          %603 = vmatprep.subr.mxu0 0.0
          %604 = vmatpush1.msra.mxu0 0.0
          %605 = vmatprep.subr.mxu0 0.0
          %606 = vmatpush1.msra.mxu0 0.0
          %607 = vmatprep.subr.mxu0 0.0
          %608 = vmatpush1.msra.mxu0 0.0
          %609 = vmatprep.subr.mxu0 0.0
          %610 = vmatpush1.msra.mxu0 0.0
          %611 = vmatprep.subr.mxu0 0.0
          %612 = vmatpush1.msra.mxu0 0.0
          %613 = vmatprep.subr.mxu0 0.0
          %614 = vmatpush1.msra.mxu0 0.0
          %615 = vmatprep.subr.mxu0 0.0
          %616 = vmatpush1.msra.mxu0 0.0
          %617 = vmatprep.mubr.f32.mxu0 0.0
          %618 = vmatmul.mubr.f32.gmra.mrb[0].mxu0 %v551
          %v619 = vpop.f32.mrb[0].mxu0
          %v620 = vadd.f32 %v548, %v619
          %v621 = vpop.f32.mrb[0].mxu0
          %622 = vdwg.mxu0
          %623 = vst [vmem:[%s287] sm:$0xff] %v620
        $region60: #{tpu_custom_call.1} parent=39 // pred_fallthru
          _
        %s624 = sand.u32 %s155, 1
        %s625 = scalar_lea.sflag [#allocation5], %s624
        %s626 = sand.u32 %s155, 1
        %s627 = smul.addr %s626, 8
        %s628 = scalar_lea.vmem [#allocation9], %s627
        // Predicated region
        $region61: #{tpu_custom_call.1} parent=39 // pred_check
          %p629 = pneg %p165
        $region62: #{tpu_custom_call.1} parent=39 // pred_check_branch
          %631 = sbr.rel (%p629) target = $region64
        $region63: #{tpu_custom_call.1} parent=39 // pred_region
          %s633 = ssub.s32 128, 128
          %634 = vsyncadd %s625, %s633
          %s635 = smul.addr %s27, 128
          %s636 = scalar_lea.hbm %s5, %s635
          %s638 = sshll.u32 %s628, 4
          %s639 = int_to_ptr.vmem [resolvable:$true] %s638
          %641 = dma.vmem_to_hbm [thread:$0]  %s639, 128, %s636, %s625
        $region64: #{tpu_custom_call.1} parent=39 // pred_fallthru
          _
      $region40: #{tpu_custom_call.1} parent=5 // pred_fallthru
        _
      %p642 = scmp.le.s32.totalorder 2, %s18
      // Predicated region
      $region65: #{tpu_custom_call.1} parent=5 // pred_check
        %p643 = pneg %p642
      $region66: #{tpu_custom_call.1} parent=5 // pred_check_branch
        %645 = sbr.rel (%p643) target = $region68
      $region67: #{tpu_custom_call.1} parent=5 // pred_region
        %s646 = ssub.s32 %s18, 2
        // Predicated region
        $region69: #{tpu_custom_call.1} parent=67 // pred_check
          %p647 = pneg %p171
        $region70: #{tpu_custom_call.1} parent=67 // pred_check_branch
          %649 = sbr.rel (%p647) target = $region72
        $region71: #{tpu_custom_call.1} parent=67 // pred_region
          %s650 = sand.u32 %s156, 1
          %s651 = scalar_lea.sflag [#allocation5], %s650
          %s652 = sand.u32 %s156, 1
          %s653 = smul.addr %s652, 8
          %s654 = scalar_lea.vmem [#allocation9], %s653
          %655 = dma.done %s651, 128
        $region72: #{tpu_custom_call.1} parent=67 // pred_fallthru
          _
      $region68: #{tpu_custom_call.1} parent=5 // pred_fallthru
        _
    $region6: #{tpu_custom_call.1} parent=1 // loop_footer
      %s22 = sadd.s32 1, %s18
    $region7: #{tpu_custom_call.1} parent=1 // loop_footer_branch
      %17 = sbr.rel target = $region3
    $region8: #{tpu_custom_call.1} parent=1 // loop_exit
      _
    %656 = vsyncpa [#allocation4], 1
    %s657 = scalar_lea.sflag [#allocation4], 1
    %658 = vsyncpa %s657, 1
    %659 = vsyncpa [#allocation7], 1
    %660 = vsyncpa [#allocation5], 1
    %s661 = scalar_lea.sflag [#allocation5], 1
    %662 = vsyncpa %s661, 1

</llo_original>
